<compile_context>
chip_gen: v7x
topology: tpu7x:2x2x1
jax: 0.10.0
libtpu: 0.0.40
codegen_flags: <defaults>
</compile_context>

<pallas_src>
import jax
import jax.numpy as jnp
from jax.experimental import pallas as pl
from jax.experimental.pallas import tpu as pltpu

H = 256  # rnn_hidden_size fixed by the module

_DMA_TARGET_BYTES = 4 << 20  # ~4 MiB of encoder_outputs per grid step


# ---------------------------------------------------------------------------
# Fused kernel: q-projection + scores + stable softmax, tiled over batch
# ---------------------------------------------------------------------------
def fused_dot_attention_kernel(x_ref, w_ref, b_ref, enc_ref, out_ref):
    # x_ref:   (TB, H)     decoder_input tile
    # w_ref:   (H, H)      PyTorch Linear weight, (out, in) layout (VMEM-resident)
    # b_ref:   (1, H)      bias (VMEM-resident)
    # enc_ref: (TB, S, H)  encoder_outputs tile
    # out_ref: (TB, S)     softmax attention weights (lane-dense)

    # q = x @ W^T + b  (NT contraction, feeds the MXU directly; hides under the
    # encoder DMA since the kernel is HBM-bound).
    q = jax.lax.dot_general(
        x_ref[...], w_ref[...],
        dimension_numbers=(((1,), (1,)), ((), ())),
        preferred_element_type=jnp.float32)
    q = q + b_ref[...]                                        # (TB, H)

    # Scores via VPU multiply + XLU lane reduce over H.  Avoids the degenerate
    # M=1 batched MXU matvec and any relayout around a size-1 dim.
    scores = jnp.sum(enc_ref[...] * q[:, None, :], axis=-1)   # (TB, S)

    # Numerically-stable softmax along the sequence axis (exact division: the
    # divide is per-row and free under the HBM stream).
    m = jnp.max(scores, axis=-1, keepdims=True)
    e = jnp.exp(scores - m)
    denom = jnp.sum(e, axis=-1, keepdims=True)
    out_ref[...] = (e / denom).astype(out_ref.dtype)


# ---------------------------------------------------------------------------
# Tiling heuristics
# ---------------------------------------------------------------------------
def _physical_vmem_bytes():
    try:
        return int(pltpu.get_tpu_info().vmem_capacity_bytes)
    except Exception:
        return 64 << 20                      # conservative fallback (v7x: 64 MiB/TC)


def _estimated_vmem_bytes(tb, S, Hdim, itemsize):
    """Estimate peak VMEM for one grid step (inputs double-buffered + temps)."""
    enc = 2 * tb * S * Hdim * itemsize       # double-buffered encoder tile
    prod = tb * S * Hdim * 4                 # f32 multiply temporary before reduce
    x = 2 * tb * Hdim * 4                    # decoder_input tile
    w = 2 * Hdim * Hdim * 4                  # resident weight (compiler still 2-bufs)
    bias = 2 * Hdim * 4
    out = 2 * tb * S * 4                     # output tile
    temps = 4 * tb * S * 4                   # scores / exp / reductions / q
    return enc + prod + x + w + bias + out + temps


def _choose_batch_tile(B, S, Hdim, itemsize):
    """Pick TB so the encoder DMA is ~4 MiB/step, estimated VMEM usage (including
    in-kernel temporaries) fits within ~3/4 of physical VMEM, the (TB, S) output
    block is legal (TB == B or TB % 8 == 0), and — when there is more than one
    grid step — the step count is even so both v7x TensorCores stay busy.
    Returns (TB, vmem_limit_bytes)."""
    physical = _physical_vmem_bytes()
    budget = physical * 3 // 4               # headroom for compiler internal scratch
    row_bytes = max(S * Hdim * itemsize, 1)

    if B <= 8:
        tb = B                               # block == full array dims is always legal
    else:
        tb = max(1, _DMA_TARGET_BYTES // row_bytes)
        tb = min(tb, B)
        tb = max(8, (tb // 8) * 8)           # sublane-aligned blocks
        # Shrink until the estimated usage (inputs + temporaries) fits the budget.
        while tb > 8 and _estimated_vmem_bytes(tb, S, Hdim, itemsize) > budget:
            tb = max(8, ((tb // 2) // 8) * 8)
        # v7x dual-TC balance: prefer an even number of grid steps.
        n_steps = pl.cdiv(B, tb)
        if n_steps > 1 and n_steps % 2 == 1:
            for cand in range(tb - 8, 7, -8):
                if pl.cdiv(B, cand) % 2 == 0:
                    tb = cand
                    break
    # TODO(synk): if S is so large that even TB=8 exceeds the budget (v7x 64 MiB),
    # tile S with an "arbitrary" grid axis and a two-pass / online softmax.

    usage = _estimated_vmem_bytes(tb, S, Hdim, itemsize)
    vmem_limit = int(min(max(usage + (8 << 20), 16 << 20), physical * 3 // 4))
    return int(tb), vmem_limit


# ---------------------------------------------------------------------------
# Wrapper
# ---------------------------------------------------------------------------
def dot_attention(encoder_outputs, decoder_input, W, b):
    """encoder_outputs: (B, S, H) f32, decoder_input: (B, H) f32,
    W: (H, H) PyTorch layout (out, in), b: (H,).  Returns (B, 1, S) f32."""
    B, S, Hdim = encoder_outputs.shape
    assert Hdim == H and decoder_input.shape == (B, H)

    TB, vmem_limit = _choose_batch_tile(B, S, Hdim, encoder_outputs.dtype.itemsize)
    grid = (pl.cdiv(B, TB),)

    grid_spec = pltpu.PrefetchScalarGridSpec(
        num_scalar_prefetch=0,
        grid=grid,
        in_specs=[
            pl.BlockSpec((TB, Hdim), lambda i: (i, 0)),         # decoder_input tile
            pl.BlockSpec((Hdim, Hdim), lambda i: (0, 0)),       # W resident in VMEM
            pl.BlockSpec((1, Hdim), lambda i: (0, 0)),          # bias resident
            pl.BlockSpec((TB, S, Hdim), lambda i: (i, 0, 0)),   # encoder_outputs tile
        ],
        out_specs=pl.BlockSpec((TB, S), lambda i: (i, 0)),      # lane-dense weights
    )

    weights = pl.pallas_call(
        fused_dot_attention_kernel,
        out_shape=jax.ShapeDtypeStruct((B, S), jnp.float32),
        grid_spec=grid_spec,
        compiler_params=pltpu.CompilerParams(
            dimension_semantics=("parallel",),
            vmem_limit_bytes=vmem_limit,
        ),
    )(decoder_input, W, b.reshape(1, Hdim), encoder_outputs)

    return weights[:, None, :]                                  # (B, 1, S)


def dot_attention_reference(encoder_outputs, decoder_input, W, b):
    q = decoder_input @ W.T + b                                 # (B, H)
    scores = jnp.einsum("bh,bsh->bs", q, encoder_outputs)
    return jax.nn.softmax(scores, axis=-1)[:, None, :]


if __name__ == "__main__":
    key = jax.random.PRNGKey(0)
    k_enc, k_dec, k_w, k_b = jax.random.split(key, 4)

    B, S = 2, 8
    encoder_outputs = jax.random.normal(k_enc, (B, S, H), dtype=jnp.float32)
    decoder_input = jax.random.normal(k_dec, (B, H), dtype=jnp.float32)

    # Deterministic synthetic Linear(H, H) parameters (PyTorch layout: (out, in)).
    bound = 1.0 / (H ** 0.5)
    W = jax.random.uniform(k_w, (H, H), jnp.float32, -bound, bound)
    b = jax.random.uniform(k_b, (H,), jnp.float32, -bound, bound)

    out = dot_attention(encoder_outputs, decoder_input, W, b)
    out = jax.block_until_ready(out)

    ref = dot_attention_reference(encoder_outputs, decoder_input, W, b)
    assert out.shape == (B, 1, S)
    assert jnp.allclose(out, ref, atol=1e-5, rtol=1e-5)

    print("KERNEL_OK")
</pallas_src>

<mosaic_0001>
module attributes {stable_mosaic.version = 11 : i64} {
  func.func @fused_dot_attention_kernel(%arg0: i32, %arg1: memref<2x256xf32, #tpu.memory_space<vmem>>, %arg2: memref<256x256xf32, #tpu.memory_space<vmem>>, %arg3: memref<1x256xf32, #tpu.memory_space<vmem>>, %arg4: memref<2x8x256xf32, #tpu.memory_space<vmem>>, %arg5: memref<2x8xf32, #tpu.memory_space<vmem>>) attributes {dimension_semantics = [#tpu.dimension_semantics<parallel>], iteration_bounds = array<i64: 1>, scalar_prefetch = 0 : i64, scratch_operands = 0 : i64, tpu.core_type = #tpu.core_type<tc>, window_params = [{transform_indices = @transform_0, window_bounds = array<i64: 2, 256>}, {pipeline_mode = #tpu.pipeline_mode<synchronous>, transform_indices = @transform_1, window_bounds = array<i64: 256, 256>}, {pipeline_mode = #tpu.pipeline_mode<synchronous>, transform_indices = @transform_2, window_bounds = array<i64: 1, 256>}, {transform_indices = @transform_3, window_bounds = array<i64: 2, 8, 256>}, {transform_indices = @transform_4, window_bounds = array<i64: 2, 8>}]} {
    %c0 = arith.constant 0 : index
    %c0_0 = arith.constant 0 : index
    %0 = vector.load %arg1[%c0, %c0_0] : memref<2x256xf32, #tpu.memory_space<vmem>>, vector<2x256xf32>
    %c0_1 = arith.constant 0 : index
    %c0_2 = arith.constant 0 : index
    %1 = vector.load %arg2[%c0_1, %c0_2] : memref<256x256xf32, #tpu.memory_space<vmem>>, vector<256x256xf32>
    %cst = arith.constant dense<0.000000e+00> : vector<2x256xf32>
    %2 = tpu.matmul %0, %1, %cst {dimension_numbers = #tpu.dot_dimension_numbers<[1], [1], [0], [0], [0, 0, 1, 0], [], []>} : vector<2x256xf32>, vector<256x256xf32>, vector<2x256xf32> -> vector<2x256xf32>
    %c0_3 = arith.constant 0 : index
    %c0_4 = arith.constant 0 : index
    %3 = vector.load %arg3[%c0_3, %c0_4] : memref<1x256xf32, #tpu.memory_space<vmem>>, vector<1x256xf32>
    %4 = vector.broadcast %3 : vector<1x256xf32> to vector<2x256xf32>
    %5 = arith.addf %2, %4 : vector<2x256xf32>
    %c0_5 = arith.constant 0 : index
    %c0_6 = arith.constant 0 : index
    %c0_7 = arith.constant 0 : index
    %6 = vector.load %arg4[%c0_5, %c0_6, %c0_7] : memref<2x8x256xf32, #tpu.memory_space<vmem>>, vector<2x8x256xf32>
    %7 = vector.shape_cast %5 : vector<2x256xf32> to vector<2x1x256xf32>
    %8 = vector.broadcast %7 : vector<2x1x256xf32> to vector<2x8x256xf32>
    %9 = arith.mulf %6, %8 : vector<2x8x256xf32>
    %cst_8 = arith.constant dense<0.000000e+00> : vector<2x8xf32>
    %10 = vector.multi_reduction <add>, %9, %cst_8 [2] : vector<2x8x256xf32> to vector<2x8xf32>
    %cst_9 = arith.constant dense<0xFF800000> : vector<2xf32>
    %11 = vector.multi_reduction <maximumf>, %10, %cst_9 [1] : vector<2x8xf32> to vector<2xf32>
    %12 = vector.shape_cast %11 : vector<2xf32> to vector<2x1xf32>
    %13 = vector.broadcast %12 : vector<2x1xf32> to vector<2x8xf32>
    %14 = arith.subf %10, %13 : vector<2x8xf32>
    %15 = math.exp %14 : vector<2x8xf32>
    %cst_10 = arith.constant dense<0.000000e+00> : vector<2xf32>
    %16 = vector.multi_reduction <add>, %15, %cst_10 [1] : vector<2x8xf32> to vector<2xf32>
    %17 = vector.shape_cast %16 : vector<2xf32> to vector<2x1xf32>
    %18 = vector.broadcast %17 : vector<2x1xf32> to vector<2x8xf32>
    %19 = arith.divf %15, %18 : vector<2x8xf32>
    %c0_11 = arith.constant 0 : index
    %c0_12 = arith.constant 0 : index
    %20 = vector.load %arg5[%c0_11, %c0_12] : memref<2x8xf32, #tpu.memory_space<vmem>>, vector<2x8xf32>
    tpu.vector_store %arg5[%c0_11, %c0_12], %19 {strides = array<i32>} : memref<2x8xf32, #tpu.memory_space<vmem>>, vector<2x8xf32>,
    return
  }
  func.func @transform_0(%arg0: i32) -> (i32, i32) {
    %c0_i32 = arith.constant 0 : i32
    %c0_i32_0 = arith.constant 0 : i32
    return %arg0, %c0_i32 : i32, i32
  }
  func.func @transform_1(%arg0: i32) -> (i32, i32) {
    %c0_i32 = arith.constant 0 : i32
    %c0_i32_0 = arith.constant 0 : i32
    %c0_i32_1 = arith.constant 0 : i32
    return %c0_i32, %c0_i32_0 : i32, i32
  }
  func.func @transform_2(%arg0: i32) -> (i32, i32) {
    %c0_i32 = arith.constant 0 : i32
    %c0_i32_0 = arith.constant 0 : i32
    %c0_i32_1 = arith.constant 0 : i32
    return %c0_i32, %c0_i32_0 : i32, i32
  }
  func.func @transform_3(%arg0: i32) -> (i32, i32, i32) {
    %c0_i32 = arith.constant 0 : i32
    %c0_i32_0 = arith.constant 0 : i32
    %c0_i32_1 = arith.constant 0 : i32
    return %arg0, %c0_i32, %c0_i32_0 : i32, i32, i32
  }
  func.func @transform_4(%arg0: i32) -> (i32, i32) {
    %c0_i32 = arith.constant 0 : i32
    %c0_i32_0 = arith.constant 0 : i32
    return %arg0, %c0_i32 : i32, i32
  }
}

</mosaic_0001>

<llo_original>
// kernel: tpu_custom_call.1
$region0: #{tpu_custom_call.1}
  #allocation0 [shape = 'u32[]', space=smem, size = 0x4, offset = 0x4, fixed_abs, tag = 'smem constant byte address 0x4 - core index']
  #allocation1 [shape = 'u32[144,128]{1,0:T(1,128)}', space=vmem, size = 0x12000, scoped, tag = 'internal scratch']
  %s0 = inlined_call_operand.hbm [shape: f32[2,256], index: 0, kind: input, shape index: {}]
  %s1 = inlined_call_operand.hbm [shape: f32[256,256], index: 1, kind: input, shape index: {}]
  %s2 = inlined_call_operand.vmem [shape: f32[1,256], index: 2, kind: input, shape index: {}]
  %s3 = inlined_call_operand.hbm [shape: f32[2,8,256], index: 3, kind: input, shape index: {}]
  %s4 = inlined_call_operand.hbm [shape: f32[2,8], index: 4, kind: output, shape index: {}]
  %s5 = sld [smem:[#allocation0]]
  $region38: #{tpu_custom_call.1} parent=0
    _
  %s7 = ssub.s32 1, %s5
  %s8 = scalar_select 0, %s7, %s5
  $region1: #{tpu_custom_call.1} parent=0
    #allocation2 [shape = 'u8[2048]{0}', space=vmem, size = 0x800, scoped, tag = 'input window, operand 0, single buffered']
    #allocation3 [shape = 's32[1]{0}', space=sflag, size = 0x4, scoped, tag = 'scoped memory for tpu_custom_call.1']
    #allocation4 [shape = 's32[1]{0}', space=sflag, size = 0x4, scoped, tag = 'scoped memory for tpu_custom_call.1']
    #allocation5 [shape = 'u8[262144]{0}', space=vmem, size = 0x40000, scoped, tag = 'input window, operand 1, single buffered']
    #allocation6 [shape = 's32[1]{0}', space=sflag, size = 0x4, scoped, tag = 'scoped memory for tpu_custom_call.1']
    #allocation7 [shape = 'u8[16384]{0}', space=vmem, size = 0x4000, scoped, tag = 'input window, operand 3, single buffered']
    #allocation8 [shape = 'u8[1024]{0}', space=vmem, size = 0x400, scoped, tag = 'output window, operand 0, single buffered']
    %9 = vsyncpa [#allocation3], 0
    %10 = vsyncpa [#allocation6], 0
    %11 = vsyncpa [#allocation4], 0
    // Predicated region
    $region2: #{tpu_custom_call.1} parent=1 // pred_check
      _
    $region3: #{tpu_custom_call.1} parent=1 // pred_check_branch
      %13 = sbr.rel (0) target = $region5
    $region4: #{tpu_custom_call.1} parent=1 // pred_region
      %s15 = ssub.s32 64, 64
      %16 = vsyncadd [#allocation3], %s15
      %s18 = sshll.u32 [#allocation2], 4
      %s19 = int_to_ptr.vmem [resolvable:$true] %s18
      %21 = dma.hbm_to_vmem [thread:$0]  %s0, 64, %s19, [#allocation3]
    $region5: #{tpu_custom_call.1} parent=1 // pred_fallthru
      _
    // Predicated region
    $region6: #{tpu_custom_call.1} parent=1 // pred_check
      _
    $region7: #{tpu_custom_call.1} parent=1 // pred_check_branch
      %23 = sbr.rel (0) target = $region9
    $region8: #{tpu_custom_call.1} parent=1 // pred_region
      %s25 = ssub.s32 8192, 8192
      %26 = vsyncadd [#allocation6], %s25
      %s27 = sshll.u32 [#allocation5], 4
      %s28 = int_to_ptr.vmem [resolvable:$true] %s27
      %33 = dma.hbm_to_vmem [thread:$0]  %s1, 8192, %s28, [#allocation6], 256, 256, 16
    $region9: #{tpu_custom_call.1} parent=1 // pred_fallthru
      _
    // Predicated region
    $region10: #{tpu_custom_call.1} parent=1 // pred_check
      _
    $region11: #{tpu_custom_call.1} parent=1 // pred_check_branch
      %35 = sbr.rel (0) target = $region13
    $region12: #{tpu_custom_call.1} parent=1 // pred_region
      _
    $region13: #{tpu_custom_call.1} parent=1 // pred_fallthru
      _
    // Predicated region
    $region14: #{tpu_custom_call.1} parent=1 // pred_check
      _
    $region15: #{tpu_custom_call.1} parent=1 // pred_check_branch
      %37 = sbr.rel (0) target = $region17
    $region16: #{tpu_custom_call.1} parent=1 // pred_region
      %s39 = ssub.s32 512, 512
      %40 = vsyncadd [#allocation6], %s39
      %s41 = sshll.u32 [#allocation7], 4
      %s42 = int_to_ptr.vmem [resolvable:$true] %s41
      %47 = dma.hbm_to_vmem [thread:$0]  %s3, 512, %s42, [#allocation6], 256, 256, 16
    $region17: #{tpu_custom_call.1} parent=1 // pred_fallthru
      _
    // Predicated region
    $region18: #{tpu_custom_call.1} parent=1 // pred_check
      _
    $region19: #{tpu_custom_call.1} parent=1 // pred_check_branch
      %49 = sbr.rel (0) target = $region21
    $region20: #{tpu_custom_call.1} parent=1 // pred_region
      %50 = dma.done [#allocation3], 64
    $region21: #{tpu_custom_call.1} parent=1 // pred_fallthru
      _
    // Predicated region
    $region22: #{tpu_custom_call.1} parent=1 // pred_check
      _
    $region23: #{tpu_custom_call.1} parent=1 // pred_check_branch
      %52 = sbr.rel (0) target = $region25
    $region24: #{tpu_custom_call.1} parent=1 // pred_region
      %53 = dma.done [#allocation6], 8192
    $region25: #{tpu_custom_call.1} parent=1 // pred_fallthru
      _
    // Predicated region
    $region26: #{tpu_custom_call.1} parent=1 // pred_check
      _
    $region27: #{tpu_custom_call.1} parent=1 // pred_check_branch
      %55 = sbr.rel (0) target = $region29
    $region28: #{tpu_custom_call.1} parent=1 // pred_region
      %56 = dma.done [#allocation6], 512
    $region29: #{tpu_custom_call.1} parent=1 // pred_fallthru
      _
    %v57 = vld [vmem:[#allocation2] sm:$0xf]
    %v58 = vld [vmem:[#allocation5] sm:$0xff]
    %v59 = vld [vmem:[#allocation5 + $0x8] sm:$0xff]
    %v60 = vld [vmem:[#allocation5 + $0x10] sm:$0xff]
    %v61 = vld [vmem:[#allocation5 + $0x18] sm:$0xff]
    %v62 = vld [vmem:[#allocation5 + $0x20] sm:$0xff]
    %v63 = vld [vmem:[#allocation5 + $0x28] sm:$0xff]
    %v64 = vld [vmem:[#allocation5 + $0x30] sm:$0xff]
    %v65 = vld [vmem:[#allocation5 + $0x38] sm:$0xff]
    %v66 = vld [vmem:[#allocation5 + $0x40] sm:$0xff]
    %v67 = vld [vmem:[#allocation5 + $0x48] sm:$0xff]
    %v68 = vld [vmem:[#allocation5 + $0x50] sm:$0xff]
    %v69 = vld [vmem:[#allocation5 + $0x58] sm:$0xff]
    %v70 = vld [vmem:[#allocation5 + $0x60] sm:$0xff]
    %v71 = vld [vmem:[#allocation5 + $0x68] sm:$0xff]
    %v72 = vld [vmem:[#allocation5 + $0x70] sm:$0xff]
    %v73 = vld [vmem:[#allocation5 + $0x78] sm:$0xff]
    %v74 = vld [vmem:[#allocation5 + $0x80] sm:$0xff]
    %v75 = vld [vmem:[#allocation5 + $0x88] sm:$0xff]
    %v76 = vld [vmem:[#allocation5 + $0x90] sm:$0xff]
    %v77 = vld [vmem:[#allocation5 + $0x98] sm:$0xff]
    %v78 = vld [vmem:[#allocation5 + $0xa0] sm:$0xff]
    %v79 = vld [vmem:[#allocation5 + $0xa8] sm:$0xff]
    %v80 = vld [vmem:[#allocation5 + $0xb0] sm:$0xff]
    %v81 = vld [vmem:[#allocation5 + $0xb8] sm:$0xff]
    %v82 = vld [vmem:[#allocation5 + $0xc0] sm:$0xff]
    %v83 = vld [vmem:[#allocation5 + $0xc8] sm:$0xff]
    %v84 = vld [vmem:[#allocation5 + $0xd0] sm:$0xff]
    %v85 = vld [vmem:[#allocation5 + $0xd8] sm:$0xff]
    %v86 = vld [vmem:[#allocation5 + $0xe0] sm:$0xff]
    %v87 = vld [vmem:[#allocation5 + $0xe8] sm:$0xff]
    %v88 = vld [vmem:[#allocation5 + $0xf0] sm:$0xff]
    %v89 = vld [vmem:[#allocation5 + $0xf8] sm:$0xff]
    %v90 = vld [vmem:[#allocation5 + $0x100] sm:$0xff]
    %v91 = vld [vmem:[#allocation5 + $0x108] sm:$0xff]
    %v92 = vld [vmem:[#allocation5 + $0x110] sm:$0xff]
    %v93 = vld [vmem:[#allocation5 + $0x118] sm:$0xff]
    %v94 = vld [vmem:[#allocation5 + $0x120] sm:$0xff]
    %v95 = vld [vmem:[#allocation5 + $0x128] sm:$0xff]
    %v96 = vld [vmem:[#allocation5 + $0x130] sm:$0xff]
    %v97 = vld [vmem:[#allocation5 + $0x138] sm:$0xff]
    %v98 = vld [vmem:[#allocation5 + $0x140] sm:$0xff]
    %v99 = vld [vmem:[#allocation5 + $0x148] sm:$0xff]
    %v100 = vld [vmem:[#allocation5 + $0x150] sm:$0xff]
    %v101 = vld [vmem:[#allocation5 + $0x158] sm:$0xff]
    %v102 = vld [vmem:[#allocation5 + $0x160] sm:$0xff]
    %v103 = vld [vmem:[#allocation5 + $0x168] sm:$0xff]
    %v104 = vld [vmem:[#allocation5 + $0x170] sm:$0xff]
    %v105 = vld [vmem:[#allocation5 + $0x178] sm:$0xff]
    %v106 = vld [vmem:[#allocation5 + $0x180] sm:$0xff]
    %v107 = vld [vmem:[#allocation5 + $0x188] sm:$0xff]
    %v108 = vld [vmem:[#allocation5 + $0x190] sm:$0xff]
    %v109 = vld [vmem:[#allocation5 + $0x198] sm:$0xff]
    %v110 = vld [vmem:[#allocation5 + $0x1a0] sm:$0xff]
    %v111 = vld [vmem:[#allocation5 + $0x1a8] sm:$0xff]
    %v112 = vld [vmem:[#allocation5 + $0x1b0] sm:$0xff]
    %v113 = vld [vmem:[#allocation5 + $0x1b8] sm:$0xff]
    %v114 = vld [vmem:[#allocation5 + $0x1c0] sm:$0xff]
    %v115 = vld [vmem:[#allocation5 + $0x1c8] sm:$0xff]
    %v116 = vld [vmem:[#allocation5 + $0x1d0] sm:$0xff]
    %v117 = vld [vmem:[#allocation5 + $0x1d8] sm:$0xff]
    %v118 = vld [vmem:[#allocation5 + $0x1e0] sm:$0xff]
    %v119 = vld [vmem:[#allocation5 + $0x1e8] sm:$0xff]
    %v120 = vld [vmem:[#allocation5 + $0x1f0] sm:$0xff]
    %v121 = vld [vmem:[#allocation5 + $0x1f8] sm:$0xff]
    %v122 = vld [vmem:[%s2] sm:$0x3]
    %v124 = vlaneseq
    %v125 = vshrl.u32 %v124, 7
    %v126 = vsub.s32 0, %v125
    %v127 = vrot.slane %v122, %v126
    %v128 = vlaneseq
    %v129 = vshrl.u32 %v128, 7
    %v130 = vsub.s32 1, %v129
    %v131 = vrot.slane %v122, %v130
    %v136 = vunpack.c.l.s4 1983009808
    %v137 = vunpack.c.0.s8 %v136
    %v138 = vlaneseq
    %v139 = vshrl.u32 %v138, 7
    %v140 = vsub.s32 %v137, %v139
    %v141 = vrot.slane %v57, %v140
    %v142 = vcombine.high %v141, %v141
    %145 = vmatprep.subr.mxu0 %v59
    %146 = vmatpush1.xpose.msra.mxu0 %v58
    %147 = vmatprep.subr.mxu0 %v61
    %148 = vmatpush1.xpose.msra.mxu0 %v60
    %149 = vmatprep.subr.mxu0 %v63
    %150 = vmatpush1.xpose.msra.mxu0 %v62
    %151 = vmatprep.subr.mxu0 %v65
    %152 = vmatpush1.xpose.msra.mxu0 %v64
    %153 = vmatprep.subr.mxu0 %v67
    %154 = vmatpush1.xpose.msra.mxu0 %v66
    %155 = vmatprep.subr.mxu0 %v69
    %156 = vmatpush1.xpose.msra.mxu0 %v68
    %157 = vmatprep.subr.mxu0 %v71
    %158 = vmatpush1.xpose.msra.mxu0 %v70
    %159 = vmatprep.subr.mxu0 %v73
    %160 = vmatpush1.xpose.msra.mxu0 %v72
    %161 = vmatprep.subr.mxu0 %v75
    %162 = vmatpush1.xpose.msra.mxu0 %v74
    %163 = vmatprep.subr.mxu0 %v77
    %164 = vmatpush1.xpose.msra.mxu0 %v76
    %165 = vmatprep.subr.mxu0 %v79
    %166 = vmatpush1.xpose.msra.mxu0 %v78
    %167 = vmatprep.subr.mxu0 %v81
    %168 = vmatpush1.xpose.msra.mxu0 %v80
    %169 = vmatprep.subr.mxu0 %v83
    %170 = vmatpush1.xpose.msra.mxu0 %v82
    %171 = vmatprep.subr.mxu0 %v85
    %172 = vmatpush1.xpose.msra.mxu0 %v84
    %173 = vmatprep.subr.mxu0 %v87
    %174 = vmatpush1.xpose.msra.mxu0 %v86
    %175 = vmatprep.subr.mxu0 %v89
    %176 = vmatpush1.xpose.msra.mxu0 %v88
    %177 = vmatprep.subr.mxu0 %v91
    %178 = vmatpush1.xpose.msra.mxu0 %v90
    %179 = vmatprep.subr.mxu0 %v93
    %180 = vmatpush1.xpose.msra.mxu0 %v92
    %181 = vmatprep.subr.mxu0 %v95
    %182 = vmatpush1.xpose.msra.mxu0 %v94
    %183 = vmatprep.subr.mxu0 %v97
    %184 = vmatpush1.xpose.msra.mxu0 %v96
    %185 = vmatprep.subr.mxu0 %v99
    %186 = vmatpush1.xpose.msra.mxu0 %v98
    %187 = vmatprep.subr.mxu0 %v101
    %188 = vmatpush1.xpose.msra.mxu0 %v100
    %189 = vmatprep.subr.mxu0 %v103
    %190 = vmatpush1.xpose.msra.mxu0 %v102
    %191 = vmatprep.subr.mxu0 %v105
    %192 = vmatpush1.xpose.msra.mxu0 %v104
    %193 = vmatprep.subr.mxu0 %v107
    %194 = vmatpush1.xpose.msra.mxu0 %v106
    %195 = vmatprep.subr.mxu0 %v109
    %196 = vmatpush1.xpose.msra.mxu0 %v108
    %197 = vmatprep.subr.mxu0 %v111
    %198 = vmatpush1.xpose.msra.mxu0 %v110
    %199 = vmatprep.subr.mxu0 %v113
    %200 = vmatpush1.xpose.msra.mxu0 %v112
    %201 = vmatprep.subr.mxu0 %v115
    %202 = vmatpush1.xpose.msra.mxu0 %v114
    %203 = vmatprep.subr.mxu0 %v117
    %204 = vmatpush1.xpose.msra.mxu0 %v116
    %205 = vmatprep.subr.mxu0 %v119
    %206 = vmatpush1.xpose.msra.mxu0 %v118
    %207 = vmatprep.subr.mxu0 %v121
    %208 = vmatpush1.xpose.msra.mxu0 %v120
    %209 = vmatprep.mubr.f32.mxu0 %v142
    %210 = vmatmul.mubr.f32.gmra.mrb[0].mxu0 %v141
    %v211 = vpop.f32.mrb[0].mxu0
    %v212 = vadd.f32 %v127, %v211
    %v213 = vpop.f32.mrb[0].mxu0
    %v214 = vadd.f32 %v131, %v213
    %215 = vdwg.mxu0
    %v216 = vld [vmem:[#allocation7] sm:$0xff]
    %v217 = vld [vmem:[#allocation7 + $0x8] sm:$0xff]
    %v218 = vld [vmem:[#allocation7 + $0x10] sm:$0xff]
    %v219 = vld [vmem:[#allocation7 + $0x18] sm:$0xff]
    %v222 = vcombine.low %v212, %v214
    %v224 = vunpack.c.l.s4 1966171168
    %v225 = vunpack.c.0.s8 %v224
    %v226 = vlaneseq
    %v227 = vshrl.u32 %v226, 7
    %v228 = vsub.s32 %v225, %v227
    %v229 = vrot.slane %v222, %v228
    %v230 = vcombine.high %v229, %v229
    %v232 = vunpack.c.l.s4 1966171168
    %v233 = vunpack.c.0.s8 %v232
    %v234 = vlaneseq
    %v235 = vshrl.u32 %v234, 7
    %v236 = vsub.s32 %v233, %v235
    %v237 = vrot.slane %v229, %v236
    %v239 = vunpack.c.l.s4 1966171168
    %v240 = vunpack.c.0.s8 %v239
    %v241 = vlaneseq
    %v242 = vshrl.u32 %v241, 7
    %v243 = vsub.s32 %v240, %v242
    %v244 = vrot.slane %v230, %v243
    %v245 = vlaneseq
    %v246 = vshrl.u32 %v245, 7
    %v247 = vsub.s32 0, %v246
    %v248 = vrot.slane %v237, %v247
    %v249 = vlaneseq
    %v250 = vshrl.u32 %v249, 7
    %v251 = vsub.s32 1, %v250
    %v252 = vrot.slane %v237, %v251
    %v253 = vlaneseq
    %v254 = vshrl.u32 %v253, 7
    %v255 = vsub.s32 0, %v254
    %v256 = vrot.slane %v244, %v255
    %v257 = vlaneseq
    %v258 = vshrl.u32 %v257, 7
    %v259 = vsub.s32 1, %v258
    %v260 = vrot.slane %v244, %v259
    %v265 = vmul.f32 %v216, %v248
    %v266 = vmul.f32 %v217, %v252
    %v267 = vmul.f32 %v218, %v256
    %v268 = vmul.f32 %v219, %v260
    %v269 = vadd.f32 %v265, %v266
    %270 = vadd.xlane.f32.xlu0 %v269
    %v271 = vpop.xlane.xlu0 %270
    %v272 = vadd.f32 %v267, %v268
    %273 = vadd.xlane.f32.xlu0 %v272
    %v274 = vpop.xlane.xlu0 %273
    %v277 = vlaneseq
    %v278 = vand.u32 %v277, 127
    %v279 = vlaneseq
    %v280 = vshrl.u32 %v279, 7
    %v281 = vsub.s32 %v278, %v280
    %v282 = vrot.slane %v271, %v281
    %v283 = vlaneseq
    %v284 = vshrl.u32 %v283, 7
    %v285 = vsub.s32 %v278, %v284
    %v286 = vrot.slane %v274, %v285
    %vm287 = vcmask 1041409
    %v288 = vsel %vm287, %v286, %v282
    %vm290 = vcmask 58368
    %v291 = vsel %vm290, %v288, -inf
    %292 = vmax.xlane.f32.xlu0 %v291
    %v293 = vpop.xlane.xlu0 %292
    %v295 = vlaneseq
    %v296 = vshrl.u32 %v295, 7
    %v297 = vsub.s32 0, %v296
    %v298 = vrot.slane %v293, %v297
    %v299 = vlaneseq
    %v300 = vshrl.u32 %v299, 7
    %v301 = vsub.s32 1, %v300
    %v302 = vrot.slane %v293, %v301
    %v305 = vsub.f32 %v271, %v298
    %v306 = vsub.f32 %v274, %v302
    %v307 = vmul.f32 %v305, 1.442695
    %v308 = vpow.pop %v307
    %v309 = vmul.f32 %v306, 1.442695
    %v310 = vpow.pop %v309
    %313 = vset.pattern.permute.xlu0 0
    %314 = vperm.xlu0 %313, %v308
    %v315 = vpop.permute.xlu0 %314
    %316 = vset.pattern.permute.xlu0 0
    %317 = vperm.xlu0 %316, %v310
    %v318 = vpop.permute.xlu0 %317
    %v319 = vlaneseq
    %v320 = vshrl.u32 %v319, 7
    %v321 = vsub.s32 %v278, %v320
    %v322 = vrot.slane %v315, %v321
    %v323 = vlaneseq
    %v324 = vshrl.u32 %v323, 7
    %v325 = vsub.s32 %v278, %v324
    %v326 = vrot.slane %v318, %v325
    %v327 = vsel %vm287, %v326, %v322
    %v329 = vsel %vm290, %v327, 0.0
    %330 = vadd.xlane.f32.xlu0 %v329
    %v331 = vpop.xlane.xlu0 %330
    %v333 = vlaneseq
    %v334 = vshrl.u32 %v333, 7
    %v335 = vsub.s32 0, %v334
    %v336 = vrot.slane %v331, %v335
    %v337 = vlaneseq
    %v338 = vshrl.u32 %v337, 7
    %v339 = vsub.s32 1, %v338
    %v340 = vrot.slane %v331, %v339
    %v343 = vrcp.pop %v336
    %v344 = vmul.f32 %v308, %v343
    %v345 = vrcp.pop %v340
    %v346 = vmul.f32 %v310, %v345
    %349 = vset.pattern.permute.xlu0 0
    %350 = vperm.xlu0 %349, %v344
    %v351 = vpop.permute.xlu0 %350
    %352 = vset.pattern.permute.xlu0 0
    %353 = vperm.xlu0 %352, %v346
    %v354 = vpop.permute.xlu0 %353
    %v355 = vlaneseq
    %v356 = vshrl.u32 %v355, 7
    %v357 = vsub.s32 %v278, %v356
    %v358 = vrot.slane %v351, %v357
    %v359 = vlaneseq
    %v360 = vshrl.u32 %v359, 7
    %v361 = vsub.s32 %v278, %v360
    %v362 = vrot.slane %v354, %v361
    %v363 = vsel %vm287, %v362, %v358
    %365 = vst.msk [vmem:[#allocation8] sm:$0x3] %vm290, %v363
    // Predicated region
    $region30: #{tpu_custom_call.1} parent=1 // pred_check
      _
    $region31: #{tpu_custom_call.1} parent=1 // pred_check_branch
      %367 = sbr.rel (0) target = $region33
    $region32: #{tpu_custom_call.1} parent=1 // pred_region
      %s369 = ssub.s32 32, 32
      %370 = vsyncadd [#allocation4], %s369
      %s372 = sshll.u32 [#allocation8], 4
      %s373 = int_to_ptr.vmem [resolvable:$true] %s372
      %375 = dma.vmem_to_hbm [thread:$0]  %s373, 32, %s4, [#allocation4]
    $region33: #{tpu_custom_call.1} parent=1 // pred_fallthru
      _
    // Predicated region
    $region34: #{tpu_custom_call.1} parent=1 // pred_check
      _
    $region35: #{tpu_custom_call.1} parent=1 // pred_check_branch
      %377 = sbr.rel (0) target = $region37
    $region36: #{tpu_custom_call.1} parent=1 // pred_region
      %378 = dma.done [#allocation4], 32
    $region37: #{tpu_custom_call.1} parent=1 // pred_fallthru
      _
    %379 = vsyncpa [#allocation3], 1
    %380 = vsyncpa [#allocation6], 1
    %381 = vsyncpa [#allocation4], 1

</llo_original>
